<compile_context>
chip_gen: v5e
topology: v5e:2x2
jax: 0.10.0
libtpu: 0.0.40
codegen_flags: <defaults>
</compile_context>

<pallas_src>
import jax
import jax.numpy as jnp
from jax.experimental import pallas as pl
from jax.experimental.pallas import tpu as pltpu


def _anr_rating_pred_kernel(u_rep_ref, i_rep_ref, u_imp_ref, i_imp_ref, out_ref):
    # (TB, A, H) blocks; upcast to f32 inside the kernel (v5e has no bf16 VPU).
    u = u_rep_ref[...].astype(jnp.float32)                      # (TB, A, H)
    v = i_rep_ref[...].astype(jnp.float32)                      # (TB, A, H)
    # (TB, A, 1) importance product; lane-broadcast over H is cheap.
    w = u_imp_ref[...].astype(jnp.float32) * i_imp_ref[...].astype(jnp.float32)

    # Single fused pass over the big data: weight, then reduce over (A, H).
    weighted = u * v * w                                        # (TB, A, H)
    rating = jnp.sum(weighted, axis=2)                          # (TB, A)
    rating = jnp.sum(rating, axis=1, keepdims=True)             # (TB, 1)
    out_ref[...] = rating.astype(out_ref.dtype)


def anr_rating_pred(user_asp_rep, item_asp_rep, user_asp_impt, item_asp_impt,
                    batch_uid, batch_iid,
                    uid_user_offset, iid_item_offset, global_offset,
                    *, block_b=2048):
    """JAX wrapper: embedding gathers + bias adds in glue, hot path in Pallas."""
    B, A, H = user_asp_rep.shape

    # Batch tile: largest tile <= block_b. Keep it a multiple of 8 (sublane
    # alignment for the (TB, 1) output block) whenever it is not the full batch.
    TB = min(block_b, B)
    if TB < B:
        TB = max(8, (TB // 8) * 8)
    grid = (pl.cdiv(B, TB),)

    # Importances are tiny (B*A); present them as (B, A, 1) so the kernel's
    # broadcast against (TB, A, H) needs no relayout. Keep them f32.
    u_imp3 = user_asp_impt.reshape(B, A, 1).astype(jnp.float32)
    i_imp3 = item_asp_impt.reshape(B, A, 1).astype(jnp.float32)

    core = pl.pallas_call(
        _anr_rating_pred_kernel,
        out_shape=jax.ShapeDtypeStruct((B, 1), jnp.float32),
        grid=grid,
        in_specs=[
            pl.BlockSpec((TB, A, H), lambda b: (b, 0, 0)),   # userAspRep (native dtype)
            pl.BlockSpec((TB, A, H), lambda b: (b, 0, 0)),   # itemAspRep (native dtype)
            pl.BlockSpec((TB, A, 1), lambda b: (b, 0, 0)),   # userAspImpt
            pl.BlockSpec((TB, A, 1), lambda b: (b, 0, 0)),   # itemAspImpt
        ],
        out_specs=pl.BlockSpec((TB, 1), lambda b: (b, 0)),
        compiler_params=pltpu.CompilerParams(
            dimension_semantics=("parallel",)),
    )(user_asp_rep, item_asp_rep, u_imp3, i_imp3)

    # Bias terms: embedding lookups + three adds on (B, 1) data — XLA glue.
    batch_user_offset = jnp.take(uid_user_offset, batch_uid, axis=0).astype(jnp.float32)
    batch_item_offset = jnp.take(iid_item_offset, batch_iid, axis=0).astype(jnp.float32)
    g = jnp.asarray(global_offset, dtype=jnp.float32).reshape(())
    return core + batch_user_offset + batch_item_offset + g


def _reference(user_asp_rep, item_asp_rep, user_asp_impt, item_asp_impt,
               batch_uid, batch_iid, uid_user_offset, iid_item_offset,
               global_offset):
    u = user_asp_rep.astype(jnp.float32)
    v = item_asp_rep.astype(jnp.float32)
    asp_rating = jnp.sum(u * v, axis=-1)                                  # (B, A)
    rating = jnp.sum(user_asp_impt.astype(jnp.float32)
                     * item_asp_impt.astype(jnp.float32) * asp_rating,
                     axis=-1, keepdims=True)                              # (B, 1)
    rating = rating + uid_user_offset[batch_uid] + iid_item_offset[batch_iid]
    rating = rating + jnp.asarray(global_offset, jnp.float32).reshape(())
    return rating


if __name__ == "__main__":
    # Small shapes consistent with the module's forward:
    #   bsz=8, num_aspects=5, h1=32, num_users=16, num_items=16
    B, A, H = 8, 5, 32
    NUM_USERS, NUM_ITEMS = 16, 16

    key = jax.random.PRNGKey(0)
    k1, k2, k3, k4, k5, k6, k7, k8, k9 = jax.random.split(key, 9)

    # Aspect representations in bf16 (halves HBM->VMEM traffic; kernel upcasts).
    user_asp_rep = jax.random.normal(k1, (B, A, H), dtype=jnp.float32).astype(jnp.bfloat16)
    item_asp_rep = jax.random.normal(k2, (B, A, H), dtype=jnp.float32).astype(jnp.bfloat16)
    # Aspect importances are softmax outputs in the model.
    user_asp_impt = jax.nn.softmax(jax.random.normal(k3, (B, A)), axis=-1)
    item_asp_impt = jax.nn.softmax(jax.random.normal(k4, (B, A)), axis=-1)
    batch_uid = jax.random.randint(k5, (B,), 0, NUM_USERS)
    batch_iid = jax.random.randint(k6, (B,), 0, NUM_ITEMS)

    # Module init fills offsets with zero; use small random values here so the
    # bias path is actually exercised by the check.
    global_offset = 0.1 * jax.random.normal(k7, (1,), dtype=jnp.float32)
    uid_user_offset = 0.1 * jax.random.normal(k8, (NUM_USERS, 1), dtype=jnp.float32)
    iid_item_offset = 0.1 * jax.random.normal(k9, (NUM_ITEMS, 1), dtype=jnp.float32)

    out = anr_rating_pred(user_asp_rep, item_asp_rep, user_asp_impt,
                          item_asp_impt, batch_uid, batch_iid,
                          uid_user_offset, iid_item_offset, global_offset)
    out = jax.block_until_ready(out)

    ref = _reference(user_asp_rep, item_asp_rep, user_asp_impt, item_asp_impt,
                     batch_uid, batch_iid, uid_user_offset, iid_item_offset,
                     global_offset)

    assert out.shape == (B, 1), out.shape
    assert jnp.allclose(out, ref, atol=1e-4, rtol=1e-4), (out, ref)
    print("KERNEL_OK")
</pallas_src>

<mosaic_0001>
module attributes {stable_mosaic.version = 11 : i64} {
  func.func @_anr_rating_pred_kernel(%arg0: i32, %arg1: memref<8x5x32xbf16, #tpu.memory_space<vmem>>, %arg2: memref<8x5x32xbf16, #tpu.memory_space<vmem>>, %arg3: memref<8x5x1xf32, #tpu.memory_space<vmem>>, %arg4: memref<8x5x1xf32, #tpu.memory_space<vmem>>, %arg5: memref<8x1xf32, #tpu.memory_space<vmem>>) attributes {dimension_semantics = [#tpu.dimension_semantics<parallel>], iteration_bounds = array<i64: 1>, scalar_prefetch = 0 : i64, scratch_operands = 0 : i64, tpu.core_type = #tpu.core_type<tc>, window_params = [{transform_indices = @transform_0, window_bounds = array<i64: 8, 5, 32>}, {transform_indices = @transform_1, window_bounds = array<i64: 8, 5, 32>}, {transform_indices = @transform_2, window_bounds = array<i64: 8, 5, 1>}, {transform_indices = @transform_3, window_bounds = array<i64: 8, 5, 1>}, {transform_indices = @transform_4, window_bounds = array<i64: 8, 1>}]} {
    %c0 = arith.constant 0 : index
    %c0_0 = arith.constant 0 : index
    %c0_1 = arith.constant 0 : index
    %0 = vector.load %arg1[%c0, %c0_0, %c0_1] : memref<8x5x32xbf16, #tpu.memory_space<vmem>>, vector<8x5x32xbf16>
    %1 = arith.extf %0 : vector<8x5x32xbf16> to vector<8x5x32xf32>
    %c0_2 = arith.constant 0 : index
    %c0_3 = arith.constant 0 : index
    %c0_4 = arith.constant 0 : index
    %2 = vector.load %arg2[%c0_2, %c0_3, %c0_4] : memref<8x5x32xbf16, #tpu.memory_space<vmem>>, vector<8x5x32xbf16>
    %3 = arith.extf %2 : vector<8x5x32xbf16> to vector<8x5x32xf32>
    %c0_5 = arith.constant 0 : index
    %c0_6 = arith.constant 0 : index
    %c0_7 = arith.constant 0 : index
    %4 = vector.load %arg3[%c0_5, %c0_6, %c0_7] : memref<8x5x1xf32, #tpu.memory_space<vmem>>, vector<8x5x1xf32>
    %c0_8 = arith.constant 0 : index
    %c0_9 = arith.constant 0 : index
    %c0_10 = arith.constant 0 : index
    %5 = vector.load %arg4[%c0_8, %c0_9, %c0_10] : memref<8x5x1xf32, #tpu.memory_space<vmem>>, vector<8x5x1xf32>
    %6 = arith.mulf %4, %5 : vector<8x5x1xf32>
    %7 = arith.mulf %1, %3 : vector<8x5x32xf32>
    %8 = vector.broadcast %6 : vector<8x5x1xf32> to vector<8x5x32xf32>
    %9 = arith.mulf %7, %8 : vector<8x5x32xf32>
    %cst = arith.constant dense<0.000000e+00> : vector<8x5xf32>
    %10 = vector.multi_reduction <add>, %9, %cst [2] : vector<8x5x32xf32> to vector<8x5xf32>
    %cst_11 = arith.constant dense<0.000000e+00> : vector<8xf32>
    %11 = vector.multi_reduction <add>, %10, %cst_11 [1] : vector<8x5xf32> to vector<8xf32>
    %12 = vector.shape_cast %11 : vector<8xf32> to vector<8x1xf32>
    %c0_12 = arith.constant 0 : index
    %c0_13 = arith.constant 0 : index
    %13 = vector.load %arg5[%c0_12, %c0_13] : memref<8x1xf32, #tpu.memory_space<vmem>>, vector<8x1xf32>
    tpu.vector_store %arg5[%c0_12, %c0_13], %12 {strides = array<i32>} : memref<8x1xf32, #tpu.memory_space<vmem>>, vector<8x1xf32>,
    return
  }
  func.func @transform_0(%arg0: i32) -> (i32, i32, i32) {
    %c0_i32 = arith.constant 0 : i32
    %c0_i32_0 = arith.constant 0 : i32
    %c0_i32_1 = arith.constant 0 : i32
    return %arg0, %c0_i32, %c0_i32_0 : i32, i32, i32
  }
  func.func @transform_1(%arg0: i32) -> (i32, i32, i32) {
    %c0_i32 = arith.constant 0 : i32
    %c0_i32_0 = arith.constant 0 : i32
    %c0_i32_1 = arith.constant 0 : i32
    return %arg0, %c0_i32, %c0_i32_0 : i32, i32, i32
  }
  func.func @transform_2(%arg0: i32) -> (i32, i32, i32) {
    %c0_i32 = arith.constant 0 : i32
    %c0_i32_0 = arith.constant 0 : i32
    %c0_i32_1 = arith.constant 0 : i32
    return %arg0, %c0_i32, %c0_i32_0 : i32, i32, i32
  }
  func.func @transform_3(%arg0: i32) -> (i32, i32, i32) {
    %c0_i32 = arith.constant 0 : i32
    %c0_i32_0 = arith.constant 0 : i32
    %c0_i32_1 = arith.constant 0 : i32
    return %arg0, %c0_i32, %c0_i32_0 : i32, i32, i32
  }
  func.func @transform_4(%arg0: i32) -> (i32, i32) {
    %c0_i32 = arith.constant 0 : i32
    %c0_i32_0 = arith.constant 0 : i32
    return %arg0, %c0_i32 : i32, i32
  }
}

</mosaic_0001>

<llo_original>
// kernel: tpu_custom_call.1
$region0: #{tpu_custom_call.1}
  #allocation0 [shape = 'u32[]', space=smem, size = 0x4, offset = 0x4, fixed_abs, tag = 'smem constant byte address 0x4 - core index']
  #allocation1 [shape = 'u32[72,128]{1,0:T(1,128)}', space=vmem, size = 0x9000, scoped, tag = 'internal scratch']
  %s0 = inlined_call_operand.vmem [shape: bf16[8,5,32], index: 0, kind: input, shape index: {}]
  %s1 = inlined_call_operand.vmem [shape: bf16[8,5,32], index: 1, kind: input, shape index: {}]
  %s2 = inlined_call_operand.vmem [shape: f32[8,5,1], index: 2, kind: input, shape index: {}]
  %s3 = inlined_call_operand.vmem [shape: f32[8,5,1], index: 3, kind: input, shape index: {}]
  %s4 = inlined_call_operand.vmem [shape: f32[8,1], index: 4, kind: output, shape index: {}]
  %s5 = sld [smem:[#allocation0]]
  $region26: #{tpu_custom_call.1} parent=0
    _
  %s7 = ssub.s32 1, %s5
  %s8 = scalar_select 0, %s7, %s5
  // Predicated region
  $region2: #{tpu_custom_call.1} parent=0 // pred_check
    _
  $region3: #{tpu_custom_call.1} parent=0 // pred_check_branch
    %10 = sbr.rel (0) target = $region5
  $region4: #{tpu_custom_call.1} parent=0 // pred_region
    _
  $region5: #{tpu_custom_call.1} parent=0 // pred_fallthru
    _
  // Predicated region
  $region6: #{tpu_custom_call.1} parent=0 // pred_check
    _
  $region7: #{tpu_custom_call.1} parent=0 // pred_check_branch
    %12 = sbr.rel (0) target = $region9
  $region8: #{tpu_custom_call.1} parent=0 // pred_region
    _
  $region9: #{tpu_custom_call.1} parent=0 // pred_fallthru
    _
  // Predicated region
  $region10: #{tpu_custom_call.1} parent=0 // pred_check
    _
  $region11: #{tpu_custom_call.1} parent=0 // pred_check_branch
    %14 = sbr.rel (0) target = $region13
  $region12: #{tpu_custom_call.1} parent=0 // pred_region
    _
  $region13: #{tpu_custom_call.1} parent=0 // pred_fallthru
    _
  // Predicated region
  $region14: #{tpu_custom_call.1} parent=0 // pred_check
    _
  $region15: #{tpu_custom_call.1} parent=0 // pred_check_branch
    %16 = sbr.rel (0) target = $region17
  $region16: #{tpu_custom_call.1} parent=0 // pred_region
    _
  $region17: #{tpu_custom_call.1} parent=0 // pred_fallthru
    _
  %v17 = vld [vmem:[%s0] sm:$0x7]
  %v18 = vld [vmem:[%s0 + $0x4] sm:$0x7]
  %v19 = vld [vmem:[%s0 + $0x8] sm:$0x7]
  %v20 = vld [vmem:[%s0 + $0xc] sm:$0x7]
  %v21 = vld [vmem:[%s0 + $0x10] sm:$0x7]
  %v22 = vld [vmem:[%s0 + $0x14] sm:$0x7]
  %v23 = vld [vmem:[%s0 + $0x18] sm:$0x7]
  %v24 = vld [vmem:[%s0 + $0x1c] sm:$0x7]
  %v25 = vunpack.c.l.bf16 %v17
  %v26 = vunpack.c.l.bf16 %v18
  %v27 = vunpack.c.l.bf16 %v19
  %v28 = vunpack.c.l.bf16 %v20
  %v29 = vunpack.c.l.bf16 %v21
  %v30 = vunpack.c.l.bf16 %v22
  %v31 = vunpack.c.l.bf16 %v23
  %v32 = vunpack.c.l.bf16 %v24
  %v33 = vld [vmem:[%s1] sm:$0x7]
  %v34 = vld [vmem:[%s1 + $0x4] sm:$0x7]
  %v35 = vld [vmem:[%s1 + $0x8] sm:$0x7]
  %v36 = vld [vmem:[%s1 + $0xc] sm:$0x7]
  %v37 = vld [vmem:[%s1 + $0x10] sm:$0x7]
  %v38 = vld [vmem:[%s1 + $0x14] sm:$0x7]
  %v39 = vld [vmem:[%s1 + $0x18] sm:$0x7]
  %v40 = vld [vmem:[%s1 + $0x1c] sm:$0x7]
  %v41 = vunpack.c.l.bf16 %v33
  %v42 = vunpack.c.l.bf16 %v34
  %v43 = vunpack.c.l.bf16 %v35
  %v44 = vunpack.c.l.bf16 %v36
  %v45 = vunpack.c.l.bf16 %v37
  %v46 = vunpack.c.l.bf16 %v38
  %v47 = vunpack.c.l.bf16 %v39
  %v48 = vunpack.c.l.bf16 %v40
  %v49 = vld [vmem:[%s2] sm:$0x1f]
  %v50 = vld [vmem:[%s2 + $0x8] sm:$0x1f]
  %v51 = vld [vmem:[%s2 + $0x10] sm:$0x1f]
  %v52 = vld [vmem:[%s2 + $0x18] sm:$0x1f]
  %v53 = vld [vmem:[%s2 + $0x20] sm:$0x1f]
  %v54 = vld [vmem:[%s2 + $0x28] sm:$0x1f]
  %v55 = vld [vmem:[%s2 + $0x30] sm:$0x1f]
  %v56 = vld [vmem:[%s2 + $0x38] sm:$0x1f]
  %v57 = vld [vmem:[%s3] sm:$0x1f]
  %v58 = vld [vmem:[%s3 + $0x8] sm:$0x1f]
  %v59 = vld [vmem:[%s3 + $0x10] sm:$0x1f]
  %v60 = vld [vmem:[%s3 + $0x18] sm:$0x1f]
  %v61 = vld [vmem:[%s3 + $0x20] sm:$0x1f]
  %v62 = vld [vmem:[%s3 + $0x28] sm:$0x1f]
  %v63 = vld [vmem:[%s3 + $0x30] sm:$0x1f]
  %v64 = vld [vmem:[%s3 + $0x38] sm:$0x1f]
  %v65 = vmul.f32 %v49, %v57
  %v66 = vmul.f32 %v50, %v58
  %v67 = vmul.f32 %v51, %v59
  %v68 = vmul.f32 %v52, %v60
  %v69 = vmul.f32 %v53, %v61
  %v70 = vmul.f32 %v54, %v62
  %v71 = vmul.f32 %v55, %v63
  %v72 = vmul.f32 %v56, %v64
  %v73 = vmul.f32 %v25, %v41
  %v74 = vmul.f32 %v26, %v42
  %v75 = vmul.f32 %v27, %v43
  %v76 = vmul.f32 %v28, %v44
  %v77 = vmul.f32 %v29, %v45
  %v78 = vmul.f32 %v30, %v46
  %v79 = vmul.f32 %v31, %v47
  %v80 = vmul.f32 %v32, %v48
  %82 = vset.pattern.permute.xlu0 0
  %83 = vperm.xlu0 %82, %v65
  %v84 = vpop.permute.xlu0 %83
  %87 = vset.pattern.permute.xlu0 0
  %88 = vperm.xlu0 %87, %v66
  %v89 = vpop.permute.xlu0 %88
  %92 = vset.pattern.permute.xlu0 0
  %93 = vperm.xlu0 %92, %v67
  %v94 = vpop.permute.xlu0 %93
  %97 = vset.pattern.permute.xlu0 0
  %98 = vperm.xlu0 %97, %v68
  %v99 = vpop.permute.xlu0 %98
  %102 = vset.pattern.permute.xlu0 0
  %103 = vperm.xlu0 %102, %v69
  %v104 = vpop.permute.xlu0 %103
  %107 = vset.pattern.permute.xlu0 0
  %108 = vperm.xlu0 %107, %v70
  %v109 = vpop.permute.xlu0 %108
  %112 = vset.pattern.permute.xlu0 0
  %113 = vperm.xlu0 %112, %v71
  %v114 = vpop.permute.xlu0 %113
  %117 = vset.pattern.permute.xlu0 0
  %118 = vperm.xlu0 %117, %v72
  %v119 = vpop.permute.xlu0 %118
  %v121 = vmul.f32 %v73, %v84
  %v122 = vmul.f32 %v74, %v89
  %v123 = vmul.f32 %v75, %v94
  %v124 = vmul.f32 %v76, %v99
  %v125 = vmul.f32 %v77, %v104
  %v126 = vmul.f32 %v78, %v109
  %v127 = vmul.f32 %v79, %v114
  %v128 = vmul.f32 %v80, %v119
  %vm129 = vcmask 258048
  %v130 = vsel %vm129, %v121, 0.0
  %131 = vadd.xlane.f32.xlu0 %v130
  %v132 = vpop.xlane.xlu0 %131
  %v133 = vsel %vm129, %v122, 0.0
  %134 = vadd.xlane.f32.xlu0 %v133
  %v135 = vpop.xlane.xlu0 %134
  %v136 = vsel %vm129, %v123, 0.0
  %137 = vadd.xlane.f32.xlu0 %v136
  %v138 = vpop.xlane.xlu0 %137
  %v139 = vsel %vm129, %v124, 0.0
  %140 = vadd.xlane.f32.xlu0 %v139
  %v141 = vpop.xlane.xlu0 %140
  %v142 = vsel %vm129, %v125, 0.0
  %143 = vadd.xlane.f32.xlu0 %v142
  %v144 = vpop.xlane.xlu0 %143
  %v145 = vsel %vm129, %v126, 0.0
  %146 = vadd.xlane.f32.xlu0 %v145
  %v147 = vpop.xlane.xlu0 %146
  %v148 = vsel %vm129, %v127, 0.0
  %149 = vadd.xlane.f32.xlu0 %v148
  %v150 = vpop.xlane.xlu0 %149
  %v151 = vsel %vm129, %v128, 0.0
  %152 = vadd.xlane.f32.xlu0 %v151
  %v153 = vpop.xlane.xlu0 %152
  %v162 = vlaneseq
  %v163 = vand.u32 %v162, 127
  %v164 = vperm.slane %v132, %v163
  %v165 = vperm.slane %v135, %v163
  %v166 = vperm.slane %v138, %v163
  %v167 = vperm.slane %v141, %v163
  %v168 = vperm.slane %v144, %v163
  %v169 = vperm.slane %v147, %v163
  %v170 = vperm.slane %v150, %v163
  %v171 = vperm.slane %v153, %v163
  %vm172 = vcmask 1041409
  %v173 = vsel %vm172, %v165, %v164
  %vm174 = vcmask 1042434
  %v175 = vsel %vm174, %v166, %v173
  %vm176 = vcmask 1043459
  %v177 = vsel %vm176, %v167, %v175
  %vm178 = vcmask 1044484
  %v179 = vsel %vm178, %v168, %v177
  %vm180 = vcmask 1045509
  %v181 = vsel %vm180, %v169, %v179
  %vm182 = vcmask 1046534
  %v183 = vsel %vm182, %v170, %v181
  %vm184 = vcmask 1047559
  %v185 = vsel %vm184, %v171, %v183
  %vm187 = vcmask 39936
  %v188 = vsel %vm187, %v185, 0.0
  %189 = vadd.xlane.f32.xlu0 %v188
  %v190 = vpop.xlane.xlu0 %189
  %vm191 = vcmask 7168
  %192 = vst.msk [vmem:[%s4] sm:$0xff] %vm191, %v190
  // Predicated region
  $region18: #{tpu_custom_call.1} parent=0 // pred_check
    _
  $region19: #{tpu_custom_call.1} parent=0 // pred_check_branch
    %194 = sbr.rel (0) target = $region21
  $region20: #{tpu_custom_call.1} parent=0 // pred_region
    _
  $region21: #{tpu_custom_call.1} parent=0 // pred_fallthru
    _
  // Predicated region
  $region22: #{tpu_custom_call.1} parent=0 // pred_check
    _
  $region23: #{tpu_custom_call.1} parent=0 // pred_check_branch
    %196 = sbr.rel (0) target = $region25
  $region24: #{tpu_custom_call.1} parent=0 // pred_region
    _
  $region25: #{tpu_custom_call.1} parent=0 // pred_fallthru
    _

</llo_original>
